<compile_context>
chip_gen: v7x
topology: tpu7x:2x2x1
jax: 0.10.0
libtpu: 0.0.40
codegen_flags: <defaults>
</compile_context>

<pallas_src>
import jax
import jax.numpy as jnp
from jax import lax
from jax.experimental import pallas as pl
from jax.experimental.pallas import tpu as pltpu

HIDDEN = 32
BN_EPS = 1e-5
LN_EPS = 1e-5
VMEM_LIMIT = 32 * 1024 * 1024      # >= default scoped limit everywhere, < physical everywhere
DEFAULT_TILE = 512                 # lane (point) tile; multiple of 128


def _round_up(x, m):
    return ((x + m - 1) // m) * m


def _row_tile(rows, max_tile=DEFAULT_TILE):
    tile = min(max_tile, _round_up(rows, 128))
    return tile, _round_up(rows, tile)


# ----------------------------------------------------------------------------
# Sampler pass 1: per-point scores on a (F, tile) transposed block.
#   h = relu(W1_fold @ x + b1_fold)        (eval BatchNorm folded into W1/b1)
#   s = sum_c h[c] * w2[c] + b2            (0.5 score scale folded into w2/b2)
# K=4 first layer = 4 broadcast VPU FMAs; 32->1 layer = sublane reduction
# (both are far too small to be worth an MXU push/pop).  Padded lanes -> -inf.
# ----------------------------------------------------------------------------
def _make_sampler_scores_kernel(n_valid, tile):
    def kernel(xt_ref, w1_ref, b1_ref, w2_ref, b2_ref, s_ref):
        x = xt_ref[...]                                   # (F, tile)
        w1 = w1_ref[...]                                  # (H, F)
        h = b1_ref[...] + w1[:, 0:1] * x[0:1, :]
        for c in range(1, w1.shape[1]):
            h = h + w1[:, c:c + 1] * x[c:c + 1, :]        # (H, tile)
        h = jnp.maximum(h, 0.0)                           # ReLU (Dropout = identity)
        s = jnp.sum(h * w2_ref[...], axis=0, keepdims=True) + b2_ref[...]   # (1, tile)
        col = pl.program_id(0) * tile + lax.broadcasted_iota(jnp.int32, (1, tile), 1)
        s_ref[...] = jnp.where(col < n_valid, s, -jnp.inf)
    return kernel


# ----------------------------------------------------------------------------
# Sampler pass 2: global softmax statistics (online running max / sum-exp)
# over all points; sequential reduction over tiles, (1,1) outputs used as
# resident accumulators (same block index every step).
# ----------------------------------------------------------------------------
def _softmax_stats_kernel(s_ref, m_ref, l_ref):
    @pl.when(pl.program_id(0) == 0)
    def _():
        m_ref[...] = jnp.full((1, 1), -jnp.inf, jnp.float32)
        l_ref[...] = jnp.zeros((1, 1), jnp.float32)

    s = s_ref[...]                                        # (1, tile); padding = -inf
    m_old = m_ref[...]
    m_new = jnp.maximum(m_old, jnp.max(s, axis=1, keepdims=True))
    l_ref[...] = (l_ref[...] * jnp.exp(m_old - m_new)
                  + jnp.sum(jnp.exp(s - m_new), axis=1, keepdims=True))
    m_ref[...] = m_new


# ----------------------------------------------------------------------------
# Sampler pass 3: normalize, w = exp(s - m) * (1 / l) -- lane-dense output.
# ----------------------------------------------------------------------------
def _softmax_normalize_kernel(s_ref, m_ref, l_ref, w_ref):
    inv_l = pl.reciprocal(l_ref[...], approx=True)
    w_ref[...] = jnp.exp(s_ref[...] - m_ref[...]) * inv_l


def run_sampler(combined, p, max_tile=DEFAULT_TILE):
    n, f = combined.shape
    tile, rows_pad = _row_tile(n, max_tile)
    num_tiles = rows_pad // tile
    xt = jnp.pad(combined.T, ((0, 0), (0, rows_pad - n)))          # (F, rows_pad)

    scores = pl.pallas_call(
        _make_sampler_scores_kernel(n, tile),
        out_shape=jax.ShapeDtypeStruct((1, rows_pad), jnp.float32),
        grid=(num_tiles,),
        in_specs=[pl.BlockSpec((f, tile), lambda i: (0, i)),
                  pl.BlockSpec(p["s_w1"].shape, lambda i: (0, 0)),
                  pl.BlockSpec(p["s_b1"].shape, lambda i: (0, 0)),
                  pl.BlockSpec(p["s_w2"].shape, lambda i: (0, 0)),
                  pl.BlockSpec(p["s_b2"].shape, lambda i: (0, 0))],
        out_specs=pl.BlockSpec((1, tile), lambda i: (0, i)),
        compiler_params=pltpu.CompilerParams(
            dimension_semantics=("parallel",), vmem_limit_bytes=VMEM_LIMIT),
    )(xt, p["s_w1"], p["s_b1"], p["s_w2"], p["s_b2"])

    m, l = pl.pallas_call(
        _softmax_stats_kernel,
        out_shape=(jax.ShapeDtypeStruct((1, 1), jnp.float32),
                   jax.ShapeDtypeStruct((1, 1), jnp.float32)),
        grid=(num_tiles,),
        in_specs=[pl.BlockSpec((1, tile), lambda i: (0, i))],
        out_specs=(pl.BlockSpec((1, 1), lambda i: (0, 0)),
                   pl.BlockSpec((1, 1), lambda i: (0, 0))),
        compiler_params=pltpu.CompilerParams(
            dimension_semantics=("arbitrary",), vmem_limit_bytes=VMEM_LIMIT),
    )(scores)

    weights = pl.pallas_call(
        _softmax_normalize_kernel,
        out_shape=jax.ShapeDtypeStruct((1, rows_pad), jnp.float32),
        grid=(num_tiles,),
        in_specs=[pl.BlockSpec((1, tile), lambda i: (0, i)),
                  pl.BlockSpec((1, 1), lambda i: (0, 0)),
                  pl.BlockSpec((1, 1), lambda i: (0, 0))],
        out_specs=pl.BlockSpec((1, tile), lambda i: (0, i)),
        compiler_params=pltpu.CompilerParams(
            dimension_semantics=("parallel",), vmem_limit_bytes=VMEM_LIMIT),
    )(scores, m, l)

    return weights[0, :n]                                          # (N,)


# ----------------------------------------------------------------------------
# Fusion MLP on the transposed (F, rows) slab of selected / reweighted points:
#   Linear(4,64) -> LN -> ReLU -> Linear(64,32) -> LN -> ReLU -> Linear(32,4)
# LayerNorm is over the channel (sublane) axis.  The K=4 first layer is 4 VPU
# FMAs; the larger layers use the MXU.  Per-layer (bias, gamma, beta) are
# packed into single (C, 3) refs to cut resident refs / DMA descriptors.
# ----------------------------------------------------------------------------
def _fusion_kernel(xt_ref, w1_ref, p1_ref, w2_ref, p2_ref, w3_ref, b3_ref, o_ref):
    x = xt_ref[...]                                       # (F, tile)
    w1 = w1_ref[...]                                      # (2H, F)
    p1 = p1_ref[...]                                      # (2H, 3) = [bias, gamma, beta]
    p2 = p2_ref[...]                                      # (H, 3)

    h = p1[:, 0:1] + w1[:, 0:1] * x[0:1, :]
    for c in range(1, w1.shape[1]):
        h = h + w1[:, c:c + 1] * x[c:c + 1, :]            # (2H, tile)
    mu = jnp.mean(h, axis=0, keepdims=True)
    var = jnp.mean((h - mu) ** 2, axis=0, keepdims=True)
    h = (h - mu) * lax.rsqrt(var + LN_EPS) * p1[:, 1:2] + p1[:, 2:3]
    h = jnp.maximum(h, 0.0)                               # ReLU (Dropout = identity)

    h = jnp.dot(w2_ref[...], h, preferred_element_type=jnp.float32) + p2[:, 0:1]   # (H, tile)
    mu = jnp.mean(h, axis=0, keepdims=True)
    var = jnp.mean((h - mu) ** 2, axis=0, keepdims=True)
    h = (h - mu) * lax.rsqrt(var + LN_EPS) * p2[:, 1:2] + p2[:, 2:3]
    h = jnp.maximum(h, 0.0)

    o_ref[...] = jnp.dot(w3_ref[...], h, preferred_element_type=jnp.float32) + b3_ref[...]


def run_fusion(selected_t, p, max_tile=DEFAULT_TILE):
    f, rows = selected_t.shape
    tile, rows_pad = _row_tile(rows, max_tile)
    xt = jnp.pad(selected_t, ((0, 0), (0, rows_pad - rows)))
    weight_args = (p["f_w1"], p["f_p1"], p["f_w2"], p["f_p2"], p["f_w3"], p["f_b3"])
    out = pl.pallas_call(
        _fusion_kernel,
        out_shape=jax.ShapeDtypeStruct((4, rows_pad), jnp.float32),
        grid=(rows_pad // tile,),
        in_specs=[pl.BlockSpec((f, tile), lambda i: (0, i))]
                 + [pl.BlockSpec(w.shape, lambda i: (0, 0)) for w in weight_args],
        out_specs=pl.BlockSpec((4, tile), lambda i: (0, i)),
        compiler_params=pltpu.CompilerParams(
            dimension_semantics=("parallel",), vmem_limit_bytes=VMEM_LIMIT),
    )(xt, *weight_args)
    return out[:, :rows]                                  # (4, rows)


# ----------------------------------------------------------------------------
# Deterministic parameter init (Xavier-uniform Linear weights in PyTorch's
# (out, in) layout, zero biases, default BatchNorm / LayerNorm affines), with
# eval-mode BatchNorm and the 0.5 score scale folded in at init time.
# ----------------------------------------------------------------------------
def _xavier_uniform(key, out_f, in_f, shape=None):
    bound = (6.0 / (in_f + out_f)) ** 0.5
    return jax.random.uniform(key, shape or (out_f, in_f), jnp.float32, -bound, bound)


def init_params(key, num_features=4, hidden=HIDDEN):
    k1, k2, k3, k4, k5 = jax.random.split(key, 5)
    p = {}
    # sampler: Linear(F,H) -> BatchNorm1d(H) -> ReLU -> Dropout -> Linear(H,1)
    w1 = _xavier_uniform(k1, hidden, num_features)                  # (H, F)
    b1 = jnp.zeros((hidden, 1), jnp.float32)
    gamma = jnp.ones((hidden, 1), jnp.float32)
    beta = jnp.zeros((hidden, 1), jnp.float32)
    r_mean = jnp.zeros((hidden, 1), jnp.float32)
    r_var = jnp.ones((hidden, 1), jnp.float32)
    scale = gamma / jnp.sqrt(r_var + BN_EPS)                        # eval BN = pure affine
    p["s_w1"] = w1 * scale                                          # BN folded into Linear
    p["s_b1"] = b1 * scale + (beta - r_mean * scale)
    p["s_w2"] = _xavier_uniform(k2, 1, hidden, shape=(hidden, 1)) * 0.5   # /2.0 folded in
    p["s_b2"] = jnp.zeros((1, 1), jnp.float32) * 0.5
    # fusion: Linear(F,2H) -> LN -> ReLU -> Linear(2H,H) -> LN -> ReLU -> Linear(H,4)
    p["f_w1"] = _xavier_uniform(k3, 2 * hidden, num_features)       # (2H, F)
    p["f_p1"] = jnp.concatenate([jnp.zeros((2 * hidden, 1), jnp.float32),   # bias
                                 jnp.ones((2 * hidden, 1), jnp.float32),    # LN gamma
                                 jnp.zeros((2 * hidden, 1), jnp.float32)],  # LN beta
                                axis=1)
    p["f_w2"] = _xavier_uniform(k4, hidden, 2 * hidden)             # (H, 2H)
    p["f_p2"] = jnp.concatenate([jnp.zeros((hidden, 1), jnp.float32),
                                 jnp.ones((hidden, 1), jnp.float32),
                                 jnp.zeros((hidden, 1), jnp.float32)], axis=1)
    p["f_w3"] = _xavier_uniform(k5, 4, hidden)                      # (4, H)
    p["f_b3"] = jnp.zeros((4, 1), jnp.float32)
    return p


# ----------------------------------------------------------------------------
# Full forward.  Per-batch top-k selection / gather / renormalization stay in
# JAX glue (data-dependent indexing), vectorized over batches with no host sync.
# ----------------------------------------------------------------------------
def dual_point_encoder_forward(spatial_features, intensity_features, batch_idx,
                               params, output_size, batch_size):
    combined = jnp.concatenate([spatial_features, intensity_features], axis=-1)  # (N, F)
    weights = run_sampler(combined, params)                                      # (N,)

    n = combined.shape[0]
    k = min(output_size, n // batch_size)

    # TODO(synk): could also be fused into the fusion kernel via scalar-prefetch
    # + pl.Element row gather to avoid materializing `selected` in HBM.
    masks = batch_idx[None, :] == jnp.arange(batch_size, dtype=batch_idx.dtype)[:, None]
    w_masked = jnp.where(masks, weights[None, :], -jnp.inf)                      # (B, N)
    top_w, top_idx = lax.top_k(w_masked, k)                                      # (B, k)
    norm_w = top_w / (jnp.sum(top_w, axis=1, keepdims=True) + 1e-8)
    selected = combined[top_idx] * norm_w[..., None]                             # (B, k, F)

    sel_t = selected.reshape(batch_size * k, -1).T                               # (F, B*k)
    out_t = run_fusion(sel_t, params)                                            # (4, B*k)
    out = out_t.T.reshape(batch_size, k, 4)
    # mirrors the module's .view(batch_size, output_size, 4) (requires k == output_size)
    return out.reshape(batch_size, output_size, 4)


# ---------------------------- pure-JAX references ----------------------------
def _sampler_ref(combined, p):
    hp = lax.Precision.HIGHEST
    h = jnp.maximum(jnp.dot(combined, p["s_w1"].T, precision=hp) + p["s_b1"][:, 0], 0.0)
    s = jnp.dot(h, p["s_w2"], precision=hp)[:, 0] + p["s_b2"][0, 0]
    return jax.nn.softmax(s, axis=0)


def _fusion_ref(x, p):                                    # x: (R, F)
    hp = lax.Precision.HIGHEST
    h = jnp.dot(x, p["f_w1"].T, precision=hp) + p["f_p1"][:, 0]
    mu = h.mean(-1, keepdims=True); var = ((h - mu) ** 2).mean(-1, keepdims=True)
    h = jnp.maximum((h - mu) * lax.rsqrt(var + LN_EPS) * p["f_p1"][:, 1] + p["f_p1"][:, 2], 0.0)
    h = jnp.dot(h, p["f_w2"].T, precision=hp) + p["f_p2"][:, 0]
    mu = h.mean(-1, keepdims=True); var = ((h - mu) ** 2).mean(-1, keepdims=True)
    h = jnp.maximum((h - mu) * lax.rsqrt(var + LN_EPS) * p["f_p2"][:, 1] + p["f_p2"][:, 2], 0.0)
    return jnp.dot(h, p["f_w3"].T, precision=hp) + p["f_b3"][:, 0]


if __name__ == "__main__":
    key = jax.random.PRNGKey(0)
    k_param, k_sp, k_int = jax.random.split(key, 3)

    batch_size = 2
    points_per_batch = 16
    output_size = 8                    # k = min(8, 32 // 2) = 8 == output_size
    n = batch_size * points_per_batch

    spatial = jax.random.normal(k_sp, (n, 3), jnp.float32)
    intensity = jax.random.normal(k_int, (n, 1), jnp.float32)
    batch_idx = jnp.repeat(jnp.arange(batch_size, dtype=jnp.int32), points_per_batch)

    params = init_params(k_param, num_features=4, hidden=HIDDEN)

    # sanity: sampler kernel vs pure-JAX reference (same folded params)
    combined = jnp.concatenate([spatial, intensity], axis=-1)
    w_kernel = jax.block_until_ready(run_sampler(combined, params))
    w_ref = _sampler_ref(combined, params)
    assert jnp.allclose(w_kernel, w_ref, rtol=3e-3, atol=1e-6), "sampler mismatch"

    out = dual_point_encoder_forward(spatial, intensity, batch_idx, params,
                                     output_size, batch_size)
    out = jax.block_until_ready(out)
    assert out.shape == (batch_size, output_size, 4)
    assert jnp.all(jnp.isfinite(out))

    # sanity: fusion kernel vs reference on the exact selected slab used above
    masks = batch_idx[None, :] == jnp.arange(batch_size, dtype=jnp.int32)[:, None]
    w_masked = jnp.where(masks, w_kernel[None, :], -jnp.inf)
    top_w, top_idx = lax.top_k(w_masked, output_size)
    norm_w = top_w / (jnp.sum(top_w, axis=1, keepdims=True) + 1e-8)
    sel = (combined[top_idx] * norm_w[..., None]).reshape(-1, 4)
    fused_ref = _fusion_ref(sel, params).reshape(batch_size, output_size, 4)
    assert jnp.allclose(out, fused_ref, rtol=2e-2, atol=2e-2), "fusion mismatch"

    print("KERNEL_OK")
</pallas_src>

<mosaic_0001>
module attributes {stable_mosaic.version = 11 : i64} {
  func.func @kernel(%arg0: i32, %arg1: memref<4x128xf32, #tpu.memory_space<vmem>>, %arg2: memref<32x4xf32, #tpu.memory_space<vmem>>, %arg3: memref<32x1xf32, #tpu.memory_space<vmem>>, %arg4: memref<32x1xf32, #tpu.memory_space<vmem>>, %arg5: memref<1x1xf32, #tpu.memory_space<vmem>>, %arg6: memref<1x128xf32, #tpu.memory_space<vmem>>) attributes {dimension_semantics = [#tpu.dimension_semantics<parallel>], iteration_bounds = array<i64: 1>, scalar_prefetch = 0 : i64, scratch_operands = 0 : i64, tpu.core_type = #tpu.core_type<tc>, window_params = [{transform_indices = @transform_0, window_bounds = array<i64: 4, 128>}, {pipeline_mode = #tpu.pipeline_mode<synchronous>, transform_indices = @transform_1, window_bounds = array<i64: 32, 4>}, {pipeline_mode = #tpu.pipeline_mode<synchronous>, transform_indices = @transform_2, window_bounds = array<i64: 32, 1>}, {pipeline_mode = #tpu.pipeline_mode<synchronous>, transform_indices = @transform_3, window_bounds = array<i64: 32, 1>}, {pipeline_mode = #tpu.pipeline_mode<synchronous>, transform_indices = @transform_4, window_bounds = array<i64: 1, 1>}, {transform_indices = @transform_5, window_bounds = array<i64: 1, 128>}]} {
    %c0 = arith.constant 0 : index
    %c0_0 = arith.constant 0 : index
    %0 = vector.load %arg1[%c0, %c0_0] : memref<4x128xf32, #tpu.memory_space<vmem>>, vector<4x128xf32>
    %c0_1 = arith.constant 0 : index
    %c0_2 = arith.constant 0 : index
    %1 = vector.load %arg2[%c0_1, %c0_2] : memref<32x4xf32, #tpu.memory_space<vmem>>, vector<32x4xf32>
    %c0_3 = arith.constant 0 : index
    %c0_4 = arith.constant 0 : index
    %2 = vector.load %arg3[%c0_3, %c0_4] : memref<32x1xf32, #tpu.memory_space<vmem>>, vector<32x1xf32>
    %3 = vector.extract_strided_slice %1 {offsets = [0, 0], sizes = [32, 1], strides = [1, 1]} : vector<32x4xf32> to vector<32x1xf32>
    %4 = vector.extract_strided_slice %0 {offsets = [0, 0], sizes = [1, 128], strides = [1, 1]} : vector<4x128xf32> to vector<1x128xf32>
    %5 = vector.broadcast %3 : vector<32x1xf32> to vector<32x128xf32>
    %6 = vector.broadcast %4 : vector<1x128xf32> to vector<32x128xf32>
    %7 = arith.mulf %5, %6 : vector<32x128xf32>
    %8 = vector.broadcast %2 : vector<32x1xf32> to vector<32x128xf32>
    %9 = arith.addf %8, %7 : vector<32x128xf32>
    %10 = vector.extract_strided_slice %1 {offsets = [0, 1], sizes = [32, 1], strides = [1, 1]} : vector<32x4xf32> to vector<32x1xf32>
    %11 = vector.extract_strided_slice %0 {offsets = [1, 0], sizes = [1, 128], strides = [1, 1]} : vector<4x128xf32> to vector<1x128xf32>
    %12 = vector.broadcast %10 : vector<32x1xf32> to vector<32x128xf32>
    %13 = vector.broadcast %11 : vector<1x128xf32> to vector<32x128xf32>
    %14 = arith.mulf %12, %13 : vector<32x128xf32>
    %15 = arith.addf %9, %14 : vector<32x128xf32>
    %16 = vector.extract_strided_slice %1 {offsets = [0, 2], sizes = [32, 1], strides = [1, 1]} : vector<32x4xf32> to vector<32x1xf32>
    %17 = vector.extract_strided_slice %0 {offsets = [2, 0], sizes = [1, 128], strides = [1, 1]} : vector<4x128xf32> to vector<1x128xf32>
    %18 = vector.broadcast %16 : vector<32x1xf32> to vector<32x128xf32>
    %19 = vector.broadcast %17 : vector<1x128xf32> to vector<32x128xf32>
    %20 = arith.mulf %18, %19 : vector<32x128xf32>
    %21 = arith.addf %15, %20 : vector<32x128xf32>
    %22 = vector.extract_strided_slice %1 {offsets = [0, 3], sizes = [32, 1], strides = [1, 1]} : vector<32x4xf32> to vector<32x1xf32>
    %23 = vector.extract_strided_slice %0 {offsets = [3, 0], sizes = [1, 128], strides = [1, 1]} : vector<4x128xf32> to vector<1x128xf32>
    %24 = vector.broadcast %22 : vector<32x1xf32> to vector<32x128xf32>
    %25 = vector.broadcast %23 : vector<1x128xf32> to vector<32x128xf32>
    %26 = arith.mulf %24, %25 : vector<32x128xf32>
    %27 = arith.addf %21, %26 : vector<32x128xf32>
    %cst = arith.constant 0.000000e+00 : f32
    %28 = vector.broadcast %cst : f32 to vector<32x128xf32>
    %29 = arith.maximumf %27, %28 : vector<32x128xf32>
    %c0_5 = arith.constant 0 : index
    %c0_6 = arith.constant 0 : index
    %30 = vector.load %arg4[%c0_5, %c0_6] : memref<32x1xf32, #tpu.memory_space<vmem>>, vector<32x1xf32>
    %31 = vector.broadcast %30 : vector<32x1xf32> to vector<32x128xf32>
    %32 = arith.mulf %29, %31 : vector<32x128xf32>
    %cst_7 = arith.constant dense<0.000000e+00> : vector<128xf32>
    %33 = vector.multi_reduction <add>, %32, %cst_7 [0] : vector<32x128xf32> to vector<128xf32>
    %34 = vector.shape_cast %33 : vector<128xf32> to vector<1x128xf32>
    %c0_8 = arith.constant 0 : index
    %c0_9 = arith.constant 0 : index
    %35 = vector.load %arg5[%c0_8, %c0_9] : memref<1x1xf32, #tpu.memory_space<vmem>>, vector<1x1xf32>
    %36 = vector.broadcast %35 : vector<1x1xf32> to vector<1x128xf32>
    %37 = arith.addf %34, %36 : vector<1x128xf32>
    %c128_i32 = arith.constant 128 : i32
    %38 = arith.muli %arg0, %c128_i32 : i32
    %39 = tpu.iota {dimensions = array<i32: 1>} : vector<1x128xi32>
    %40 = vector.broadcast %38 : i32 to vector<1x128xi32>
    %41 = arith.addi %40, %39 : vector<1x128xi32>
    %c32_i32 = arith.constant 32 : i32
    %42 = vector.broadcast %c32_i32 : i32 to vector<1x128xi32>
    %43 = arith.cmpi slt, %41, %42 : vector<1x128xi32>
    %cst_10 = arith.constant 0xFF800000 : f32
    %44 = vector.broadcast %cst_10 : f32 to vector<1x128xf32>
    %45 = arith.select %43, %37, %44 : vector<1x128xi1>, vector<1x128xf32>
    %c0_11 = arith.constant 0 : index
    %c0_12 = arith.constant 0 : index
    %46 = vector.load %arg6[%c0_11, %c0_12] : memref<1x128xf32, #tpu.memory_space<vmem>>, vector<1x128xf32>
    tpu.vector_store %arg6[%c0_11, %c0_12], %45 {strides = array<i32>} : memref<1x128xf32, #tpu.memory_space<vmem>>, vector<1x128xf32>,
    return
  }
  func.func @transform_0(%arg0: i32) -> (i32, i32) {
    %c0_i32 = arith.constant 0 : i32
    %c0_i32_0 = arith.constant 0 : i32
    return %c0_i32, %arg0 : i32, i32
  }
  func.func @transform_1(%arg0: i32) -> (i32, i32) {
    %c0_i32 = arith.constant 0 : i32
    %c0_i32_0 = arith.constant 0 : i32
    %c0_i32_1 = arith.constant 0 : i32
    return %c0_i32, %c0_i32_0 : i32, i32
  }
  func.func @transform_2(%arg0: i32) -> (i32, i32) {
    %c0_i32 = arith.constant 0 : i32
    %c0_i32_0 = arith.constant 0 : i32
    %c0_i32_1 = arith.constant 0 : i32
    return %c0_i32, %c0_i32_0 : i32, i32
  }
  func.func @transform_3(%arg0: i32) -> (i32, i32) {
    %c0_i32 = arith.constant 0 : i32
    %c0_i32_0 = arith.constant 0 : i32
    %c0_i32_1 = arith.constant 0 : i32
    return %c0_i32, %c0_i32_0 : i32, i32
  }
  func.func @transform_4(%arg0: i32) -> (i32, i32) {
    %c0_i32 = arith.constant 0 : i32
    %c0_i32_0 = arith.constant 0 : i32
    %c0_i32_1 = arith.constant 0 : i32
    return %c0_i32, %c0_i32_0 : i32, i32
  }
  func.func @transform_5(%arg0: i32) -> (i32, i32) {
    %c0_i32 = arith.constant 0 : i32
    %c0_i32_0 = arith.constant 0 : i32
    return %c0_i32, %arg0 : i32, i32
  }
}

</mosaic_0001>

<llo_original>
// kernel: tpu_custom_call.1
$region0: #{tpu_custom_call.1}
  #allocation0 [shape = 'u32[]', space=smem, size = 0x4, offset = 0x4, fixed_abs, tag = 'smem constant byte address 0x4 - core index']
  #allocation1 [shape = 'u32[144,128]{1,0:T(1,128)}', space=vmem, size = 0x12000, scoped, tag = 'internal scratch']
  #allocation2 [shape = 'f32[1,1]{1,0:T(1,128)S(1)}', space=vmem, size = 0x200, scoped, tag = 'scoped memory for tpu_custom_call.1']
  %s0 = inlined_call_operand.vmem [shape: f32[4,128], index: 0, kind: input, shape index: {}]
  %s1 = inlined_call_operand.vmem [shape: f32[32,4], index: 1, kind: input, shape index: {}]
  %s2 = inlined_call_operand.vmem [shape: f32[32,1], index: 2, kind: input, shape index: {}]
  %s3 = inlined_call_operand.vmem [shape: f32[32,1], index: 3, kind: input, shape index: {}]
  %s4 = inlined_call_operand.<no memory space> [shape: f32[1,1], index: 4, kind: input, shape index: {}]
  %s5 = inlined_call_operand.hbm [shape: f32[1,128], index: 5, kind: output, shape index: {}]
  %s6 = sld [smem:[#allocation0]]
  $region30: #{tpu_custom_call.1} parent=0
    _
  %s8 = ssub.s32 1, %s6
  %s9 = scalar_select 0, %s8, %s6
  %v10 = vstv %s4
  %11 = vst [vmem:[#allocation2] sm:$0x1] %v10
  $region1: #{tpu_custom_call.1} parent=0
    #allocation3 [shape = 'u8[512]{0}', space=vmem, size = 0x400, scoped, tag = 'output window, operand 0, single buffered']
    #allocation4 [shape = 's32[1]{0}', space=sflag, size = 0x4, scoped, tag = 'scoped memory for tpu_custom_call.1']
    %12 = vsyncpa [#allocation4], 0
    // Predicated region
    $region2: #{tpu_custom_call.1} parent=1 // pred_check
      _
    $region3: #{tpu_custom_call.1} parent=1 // pred_check_branch
      %14 = sbr.rel (0) target = $region5
    $region4: #{tpu_custom_call.1} parent=1 // pred_region
      _
    $region5: #{tpu_custom_call.1} parent=1 // pred_fallthru
      _
    // Predicated region
    $region6: #{tpu_custom_call.1} parent=1 // pred_check
      _
    $region7: #{tpu_custom_call.1} parent=1 // pred_check_branch
      %16 = sbr.rel (0) target = $region9
    $region8: #{tpu_custom_call.1} parent=1 // pred_region
      _
    $region9: #{tpu_custom_call.1} parent=1 // pred_fallthru
      _
    // Predicated region
    $region10: #{tpu_custom_call.1} parent=1 // pred_check
      _
    $region11: #{tpu_custom_call.1} parent=1 // pred_check_branch
      %18 = sbr.rel (0) target = $region13
    $region12: #{tpu_custom_call.1} parent=1 // pred_region
      _
    $region13: #{tpu_custom_call.1} parent=1 // pred_fallthru
      _
    // Predicated region
    $region14: #{tpu_custom_call.1} parent=1 // pred_check
      _
    $region15: #{tpu_custom_call.1} parent=1 // pred_check_branch
      %20 = sbr.rel (0) target = $region17
    $region16: #{tpu_custom_call.1} parent=1 // pred_region
      _
    $region17: #{tpu_custom_call.1} parent=1 // pred_fallthru
      _
    // Predicated region
    $region18: #{tpu_custom_call.1} parent=1 // pred_check
      _
    $region19: #{tpu_custom_call.1} parent=1 // pred_check_branch
      %22 = sbr.rel (0) target = $region21
    $region20: #{tpu_custom_call.1} parent=1 // pred_region
      _
    $region21: #{tpu_custom_call.1} parent=1 // pred_fallthru
      _
    %v23 = vld [vmem:[%s0] sm:$0xf]
    %v24 = vld [vmem:[%s1] sm:$0xff]
    %v25 = vld [vmem:[%s1 + $0x8] sm:$0xff]
    %v26 = vld [vmem:[%s1 + $0x10] sm:$0xff]
    %v27 = vld [vmem:[%s1 + $0x18] sm:$0xff]
    %v28 = vld [vmem:[%s2] sm:$0xff]
    %v29 = vld [vmem:[%s2 + $0x8] sm:$0xff]
    %v30 = vld [vmem:[%s2 + $0x10] sm:$0xff]
    %v31 = vld [vmem:[%s2 + $0x18] sm:$0xff]
    %33 = vset.pattern.permute.xlu0 0
    %34 = vperm.xlu0 %33, %v24
    %v35 = vpop.permute.xlu0 %34
    %38 = vset.pattern.permute.xlu0 0
    %39 = vperm.xlu0 %38, %v25
    %v40 = vpop.permute.xlu0 %39
    %43 = vset.pattern.permute.xlu0 0
    %44 = vperm.xlu0 %43, %v26
    %v45 = vpop.permute.xlu0 %44
    %48 = vset.pattern.permute.xlu0 0
    %49 = vperm.xlu0 %48, %v27
    %v50 = vpop.permute.xlu0 %49
    %v52 = vlaneseq
    %v53 = vshrl.u32 %v52, 7
    %v54 = vsub.s32 0, %v53
    %v55 = vrot.slane %v23, %v54
    %v56 = vmul.f32 %v35, %v55
    %v57 = vmul.f32 %v40, %v55
    %v58 = vmul.f32 %v45, %v55
    %v59 = vmul.f32 %v50, %v55
    %61 = vset.pattern.permute.xlu0 0
    %62 = vperm.xlu0 %61, %v28
    %v63 = vpop.permute.xlu0 %62
    %66 = vset.pattern.permute.xlu0 0
    %67 = vperm.xlu0 %66, %v29
    %v68 = vpop.permute.xlu0 %67
    %71 = vset.pattern.permute.xlu0 0
    %72 = vperm.xlu0 %71, %v30
    %v73 = vpop.permute.xlu0 %72
    %76 = vset.pattern.permute.xlu0 0
    %77 = vperm.xlu0 %76, %v31
    %v78 = vpop.permute.xlu0 %77
    %v80 = vadd.f32 %v63, %v56
    %v81 = vadd.f32 %v68, %v57
    %v82 = vadd.f32 %v73, %v58
    %v83 = vadd.f32 %v78, %v59
    %84 = vset.pattern.permute.xlu0 1
    %85 = vperm.xlu0 %84, %v24
    %v86 = vpop.permute.xlu0 %85
    %88 = vset.pattern.permute.xlu0 1
    %89 = vperm.xlu0 %88, %v25
    %v90 = vpop.permute.xlu0 %89
    %92 = vset.pattern.permute.xlu0 1
    %93 = vperm.xlu0 %92, %v26
    %v94 = vpop.permute.xlu0 %93
    %96 = vset.pattern.permute.xlu0 1
    %97 = vperm.xlu0 %96, %v27
    %v98 = vpop.permute.xlu0 %97
    %v100 = vlaneseq
    %v101 = vshrl.u32 %v100, 7
    %v102 = vsub.s32 1, %v101
    %v103 = vrot.slane %v23, %v102
    %v104 = vmul.f32 %v86, %v103
    %v105 = vmul.f32 %v90, %v103
    %v106 = vmul.f32 %v94, %v103
    %v107 = vmul.f32 %v98, %v103
    %v108 = vadd.f32 %v80, %v104
    %v109 = vadd.f32 %v81, %v105
    %v110 = vadd.f32 %v82, %v106
    %v111 = vadd.f32 %v83, %v107
    %112 = vset.pattern.permute.xlu0 2
    %113 = vperm.xlu0 %112, %v24
    %v114 = vpop.permute.xlu0 %113
    %116 = vset.pattern.permute.xlu0 2
    %117 = vperm.xlu0 %116, %v25
    %v118 = vpop.permute.xlu0 %117
    %120 = vset.pattern.permute.xlu0 2
    %121 = vperm.xlu0 %120, %v26
    %v122 = vpop.permute.xlu0 %121
    %124 = vset.pattern.permute.xlu0 2
    %125 = vperm.xlu0 %124, %v27
    %v126 = vpop.permute.xlu0 %125
    %v128 = vlaneseq
    %v129 = vshrl.u32 %v128, 7
    %v130 = vsub.s32 2, %v129
    %v131 = vrot.slane %v23, %v130
    %v132 = vmul.f32 %v114, %v131
    %v133 = vmul.f32 %v118, %v131
    %v134 = vmul.f32 %v122, %v131
    %v135 = vmul.f32 %v126, %v131
    %v136 = vadd.f32 %v108, %v132
    %v137 = vadd.f32 %v109, %v133
    %v138 = vadd.f32 %v110, %v134
    %v139 = vadd.f32 %v111, %v135
    %140 = vset.pattern.permute.xlu0 3
    %141 = vperm.xlu0 %140, %v24
    %v142 = vpop.permute.xlu0 %141
    %144 = vset.pattern.permute.xlu0 3
    %145 = vperm.xlu0 %144, %v25
    %v146 = vpop.permute.xlu0 %145
    %148 = vset.pattern.permute.xlu0 3
    %149 = vperm.xlu0 %148, %v26
    %v150 = vpop.permute.xlu0 %149
    %152 = vset.pattern.permute.xlu0 3
    %153 = vperm.xlu0 %152, %v27
    %v154 = vpop.permute.xlu0 %153
    %v156 = vlaneseq
    %v157 = vshrl.u32 %v156, 7
    %v158 = vsub.s32 3, %v157
    %v159 = vrot.slane %v23, %v158
    %v160 = vmul.f32 %v142, %v159
    %v161 = vmul.f32 %v146, %v159
    %v162 = vmul.f32 %v150, %v159
    %v163 = vmul.f32 %v154, %v159
    %v164 = vadd.f32 %v136, %v160
    %v165 = vadd.f32 %v137, %v161
    %v166 = vadd.f32 %v138, %v162
    %v167 = vadd.f32 %v139, %v163
    %v168 = vmax.f32 %v164, 0.0
    %v169 = vmax.f32 %v165, 0.0
    %v170 = vmax.f32 %v166, 0.0
    %v171 = vmax.f32 %v167, 0.0
    %v172 = vld [vmem:[%s3] sm:$0xff]
    %v173 = vld [vmem:[%s3 + $0x8] sm:$0xff]
    %v174 = vld [vmem:[%s3 + $0x10] sm:$0xff]
    %v175 = vld [vmem:[%s3 + $0x18] sm:$0xff]
    %177 = vset.pattern.permute.xlu0 0
    %178 = vperm.xlu0 %177, %v172
    %v179 = vpop.permute.xlu0 %178
    %182 = vset.pattern.permute.xlu0 0
    %183 = vperm.xlu0 %182, %v173
    %v184 = vpop.permute.xlu0 %183
    %187 = vset.pattern.permute.xlu0 0
    %188 = vperm.xlu0 %187, %v174
    %v189 = vpop.permute.xlu0 %188
    %192 = vset.pattern.permute.xlu0 0
    %193 = vperm.xlu0 %192, %v175
    %v194 = vpop.permute.xlu0 %193
    %v196 = vmul.f32 %v168, %v179
    %v197 = vmul.f32 %v169, %v184
    %v198 = vmul.f32 %v170, %v189
    %v199 = vmul.f32 %v171, %v194
    %v200 = vadd.f32 %v196, %v197
    %v201 = vadd.f32 %v200, %v198
    %v202 = vadd.f32 %v201, %v199
    %v203 = vrot.slane %v202, 4
    %v204 = vadd.f32 %v202, %v203
    %v205 = vrot.slane %v204, 2
    %v206 = vadd.f32 %v204, %v205
    %v207 = vrot.slane %v206, 1
    %v208 = vadd.f32 %v206, %v207
    %v209 = vld [vmem:[#allocation2] sm:$0x1]
    %211 = vset.pattern.permute.xlu0 0
    %212 = vperm.xlu0 %211, %v209
    %v213 = vpop.permute.xlu0 %212
    %v215 = vlaneseq
    %v216 = vshrl.u32 %v215, 7
    %v217 = vsub.s32 0, %v216
    %v218 = vrot.slane %v213, %v217
    %v219 = vadd.f32 %v208, %v218
    %s220 = smul.u32 0, 128
    %v221 = vlaneseq
    %v222 = vand.u32 %v221, 127
    %v223 = vstv %s220
    %v224 = vadd.s32 %v223, %v222
    %vm225 = vcmp.lt.s32.totalorder %v224, 32
    %v226 = vsel %vm225, %v219, -inf
    %227 = vst [vmem:[#allocation3] sm:$0x1] %v226
    // Predicated region
    $region22: #{tpu_custom_call.1} parent=1 // pred_check
      _
    $region23: #{tpu_custom_call.1} parent=1 // pred_check_branch
      %229 = sbr.rel (0) target = $region25
    $region24: #{tpu_custom_call.1} parent=1 // pred_region
      %s231 = ssub.s32 16, 16
      %232 = vsyncadd [#allocation4], %s231
      %s234 = sshll.u32 [#allocation3], 4
      %s235 = int_to_ptr.vmem [resolvable:$true] %s234
      %237 = dma.vmem_to_hbm [thread:$0]  %s235, 16, %s5, [#allocation4]
    $region25: #{tpu_custom_call.1} parent=1 // pred_fallthru
      _
    // Predicated region
    $region26: #{tpu_custom_call.1} parent=1 // pred_check
      _
    $region27: #{tpu_custom_call.1} parent=1 // pred_check_branch
      %239 = sbr.rel (0) target = $region29
    $region28: #{tpu_custom_call.1} parent=1 // pred_region
      %240 = dma.done [#allocation4], 16
    $region29: #{tpu_custom_call.1} parent=1 // pred_fallthru
      _
    %241 = vsyncpa [#allocation4], 1

</llo_original>
